<compile_context>
chip_gen: v7x
topology: tpu7x:2x2x1
jax: 0.10.0
libtpu: 0.0.40
codegen_flags: <defaults>
</compile_context>

<pallas_src>
import functools

import jax
import jax.numpy as jnp
from jax.experimental import pallas as pl
from jax.experimental.pallas import tpu as pltpu


def _round_up(x, m):
    return ((x + m - 1) // m) * m


def _pick_tb(Bp, S, tb_max):
    """Batch-tile (lane) width: big enough to amortize grid-step overhead, small
    enough that the (16, tb) f32 hidden activations stay a couple MiB, and split
    into >= 2 grid steps when the batch allows it (v7x dual-TC sharding)."""
    target = max(4096, (2 << 20) // max(2 * S, 1))   # ~2 MiB of streamed state / step
    tb = min(tb_max, target)
    if Bp > 128:
        tb = min(tb, _round_up(pl.cdiv(Bp, 2), 128))  # >= 2 parallel grid steps
    tb = min(tb, Bp)
    return max(128, (tb // 128) * 128)


def _critic_kernel(xT_ref, w1_ref, b1_ref, w2_ref, b2_ref, w3_ref, b3_ref, o_ref):
    # xT_ref: (S, TB) stream dtype  -- batch on the lane axis (pipelined tile)
    # w1_ref: (16, S)  stream dtype  b1_ref: (16, 1) f32
    # w2_ref: (16, 16) stream dtype  b2_ref: (16, 1) f32
    # w3_ref: (16, 1)  f32           b3_ref: (1, 1)  f32
    # o_ref : (1, TB)                -- lane-dense output slab
    xT = xT_ref[...]
    h1 = jnp.dot(w1_ref[...], xT, preferred_element_type=jnp.float32) + b1_ref[...]
    h1 = jnp.maximum(h1, 0.0)                                    # (16, TB) f32
    h2 = jnp.dot(w2_ref[...], h1.astype(w2_ref.dtype),
                 preferred_element_type=jnp.float32) + b2_ref[...]
    h2 = jnp.maximum(h2, 0.0)                                    # (16, TB) f32
    # Final 16 -> 1 layer on VPU + XLU (sublane reduce), not an N=1 MXU matmul.
    v = jnp.sum(h2 * w3_ref[...], axis=0, keepdims=True) + b3_ref[...]
    o_ref[...] = v.astype(o_ref.dtype)


def _prep_params(params, stream_dtype):
    (w1, b1), (w2, b2), (w3, b3) = params
    H = w1.shape[0]
    return (w1.astype(stream_dtype),
            b1.reshape(H, 1).astype(jnp.float32),
            w2.astype(stream_dtype),
            b2.reshape(H, 1).astype(jnp.float32),
            w3.reshape(H, 1).astype(jnp.float32),
            b3.reshape(1, 1).astype(jnp.float32))


def _critic_call(xT, w1k, b1k, w2k, b2k, w3k, b3k, *, tb, out_dtype):
    S, Bp = xT.shape
    H = w1k.shape[0]
    grid = (pl.cdiv(Bp, tb),)

    def resident(shape):
        # Constant index_map: stays resident in VMEM across all grid steps.
        return pl.BlockSpec(shape, lambda i: (0, 0))

    return pl.pallas_call(
        _critic_kernel,
        out_shape=jax.ShapeDtypeStruct((1, Bp), out_dtype),
        grid=grid,
        in_specs=[
            pl.BlockSpec((S, tb), lambda i: (0, i)),   # state tile (pipelined DMA)
            resident((H, S)),
            resident((H, 1)),
            resident((H, H)),
            resident((H, 1)),
            resident((H, 1)),
            resident((1, 1)),
        ],
        out_specs=pl.BlockSpec((1, tb), lambda i: (0, i)),   # lane-dense output slab
        compiler_params=pltpu.CompilerParams(
            dimension_semantics=("parallel",),      # v7x: shard batch tiles across 2 TCs
            vmem_limit_bytes=32 * 1024 * 1024,
        ),
    )(xT, w1k, b1k, w2k, b2k, w3k, b3k)


@functools.partial(jax.jit, static_argnames=("tb_max", "out_dtype"))
def critic_forward_transposed(xT, params, *, tb_max=32768, out_dtype=jnp.float32):
    """xT: (state_dim, B) already in the stream dtype (ideally bf16, B % 128 == 0).
    Skips the wrapper-side transpose/cast HBM pass entirely. Returns (1, B)."""
    S, B = xT.shape
    Bp = _round_up(B, 128)
    if Bp != B:
        xT = jnp.pad(xT, ((0, 0), (0, Bp - B)))       # <=127 cols, not a tile multiple
    tb = _pick_tb(Bp, S, tb_max)
    out = _critic_call(xT, *_prep_params(params, xT.dtype), tb=tb, out_dtype=out_dtype)
    return out[:, :B]


@functools.partial(jax.jit, static_argnames=("tb_max", "stream_dtype", "out_dtype"))
def critic_forward(state, params, *, tb_max=32768,
                   stream_dtype=jnp.bfloat16, out_dtype=jnp.float32):
    """state: (B, state_dim) f32; params in PyTorch nn.Linear layout -> (B, 1).

    stream_dtype: dtype for the state stream + first two matmul operands. bf16
      (default) halves HBM read traffic; pass jnp.float32 for the exact module
      dtype flow. Accumulation/bias/ReLU are always f32 in-kernel.
    out_dtype: output dtype (bf16 halves output traffic if the consumer tolerates it).
    """
    xT = state.T.astype(stream_dtype)   # single fused transpose+cast pass
    out = critic_forward_transposed(xT, params, tb_max=tb_max, out_dtype=out_dtype)
    return out.T                         # (B, 1)


def init_params(key, state_dim, hidden=16):
    """PyTorch nn.Linear layout: weight (out, in), bias (out,), U(-1/sqrt(in), 1/sqrt(in))."""
    ks = jax.random.split(key, 6)

    def linear(kw, kb, fan_in, fan_out):
        bound = 1.0 / jnp.sqrt(jnp.float32(fan_in))
        w = jax.random.uniform(kw, (fan_out, fan_in), jnp.float32, -bound, bound)
        b = jax.random.uniform(kb, (fan_out,), jnp.float32, -bound, bound)
        return w, b

    return (
        linear(ks[0], ks[1], state_dim, hidden),
        linear(ks[2], ks[3], hidden, hidden),
        linear(ks[4], ks[5], hidden, 1),
    )


def critic_reference_f32(state, params):
    (w1, b1), (w2, b2), (w3, b3) = params
    h = jnp.maximum(state @ w1.T + b1, 0.0)
    h = jnp.maximum(h @ w2.T + b2, 0.0)
    return h @ w3.T + b3


def critic_reference_bf16(state, params):
    # Mimics the kernel's default dtype flow (bf16 matmul inputs, f32 accumulation).
    (w1, b1), (w2, b2), (w3, b3) = params
    rd = lambda a: a.astype(jnp.bfloat16).astype(jnp.float32)
    hp = jax.lax.Precision.HIGHEST
    h1 = jnp.maximum(jnp.dot(rd(state), rd(w1).T, precision=hp) + b1, 0.0)
    h2 = jnp.maximum(jnp.dot(rd(h1), rd(w2).T, precision=hp) + b2, 0.0)
    return jnp.dot(h2, w3.T, precision=hp) + b3


if __name__ == "__main__":
    key = jax.random.PRNGKey(0)
    k_state, k_params, k_state2 = jax.random.split(key, 3)

    state_dim = 4
    params = init_params(k_params, state_dim)

    # Case 1: tiny batch (single tile, B < 128).
    state = jax.random.normal(k_state, (2, state_dim), jnp.float32)
    out = jax.block_until_ready(critic_forward(state, params))
    assert out.shape == (2, 1)
    assert jnp.allclose(out, critic_reference_bf16(state, params), atol=2e-3, rtol=2e-3)
    assert jnp.allclose(out, critic_reference_f32(state, params), atol=5e-2, rtol=5e-2)

    # Case 2: ragged batch (not a multiple of 128) with a multi-step grid (2 tiles).
    state2 = jax.random.normal(k_state2, (300, state_dim), jnp.float32)
    out2 = jax.block_until_ready(critic_forward(state2, params))
    assert out2.shape == (300, 1)
    assert jnp.allclose(out2, critic_reference_bf16(state2, params), atol=2e-3, rtol=2e-3)
    assert jnp.allclose(out2, critic_reference_f32(state2, params), atol=5e-2, rtol=5e-2)

    # Case 3: producer-side (state_dim, B) bf16 layout -> no wrapper transpose pass.
    xT2 = state2.T.astype(jnp.bfloat16)
    out2_t = jax.block_until_ready(critic_forward_transposed(xT2, params))
    assert out2_t.shape == (1, 300)
    assert jnp.allclose(out2_t.T, out2, atol=1e-5, rtol=1e-5)

    # Case 4: opt-in f32 streaming (documented precision knob matching module dtypes).
    out_f32 = jax.block_until_ready(
        critic_forward(state, params, stream_dtype=jnp.float32))
    assert jnp.allclose(out_f32, critic_reference_f32(state, params), atol=5e-2, rtol=5e-2)

    print("KERNEL_OK")
</pallas_src>

<mosaic_0001>
module attributes {stable_mosaic.version = 11 : i64} {
  func.func @_critic_kernel(%arg0: i32, %arg1: memref<4x128xbf16, #tpu.memory_space<vmem>>, %arg2: memref<16x4xbf16, #tpu.memory_space<vmem>>, %arg3: memref<16x1xf32, #tpu.memory_space<vmem>>, %arg4: memref<16x16xbf16, #tpu.memory_space<vmem>>, %arg5: memref<16x1xf32, #tpu.memory_space<vmem>>, %arg6: memref<16x1xf32, #tpu.memory_space<vmem>>, %arg7: memref<1x1xf32, #tpu.memory_space<vmem>>, %arg8: memref<1x128xf32, #tpu.memory_space<vmem>>) attributes {dimension_semantics = [#tpu.dimension_semantics<parallel>], iteration_bounds = array<i64: 1>, scalar_prefetch = 0 : i64, scratch_operands = 0 : i64, tpu.core_type = #tpu.core_type<tc>, window_params = [{transform_indices = @transform_0, window_bounds = array<i64: 4, 128>}, {pipeline_mode = #tpu.pipeline_mode<synchronous>, transform_indices = @transform_1, window_bounds = array<i64: 16, 4>}, {pipeline_mode = #tpu.pipeline_mode<synchronous>, transform_indices = @transform_2, window_bounds = array<i64: 16, 1>}, {pipeline_mode = #tpu.pipeline_mode<synchronous>, transform_indices = @transform_3, window_bounds = array<i64: 16, 16>}, {pipeline_mode = #tpu.pipeline_mode<synchronous>, transform_indices = @transform_4, window_bounds = array<i64: 16, 1>}, {pipeline_mode = #tpu.pipeline_mode<synchronous>, transform_indices = @transform_5, window_bounds = array<i64: 16, 1>}, {pipeline_mode = #tpu.pipeline_mode<synchronous>, transform_indices = @transform_6, window_bounds = array<i64: 1, 1>}, {transform_indices = @transform_7, window_bounds = array<i64: 1, 128>}]} {
    %c0 = arith.constant 0 : index
    %c0_0 = arith.constant 0 : index
    %0 = vector.load %arg1[%c0, %c0_0] : memref<4x128xbf16, #tpu.memory_space<vmem>>, vector<4x128xbf16>
    %c0_1 = arith.constant 0 : index
    %c0_2 = arith.constant 0 : index
    %1 = vector.load %arg2[%c0_1, %c0_2] : memref<16x4xbf16, #tpu.memory_space<vmem>>, vector<16x4xbf16>
    %cst = arith.constant dense<0.000000e+00> : vector<16x128xf32>
    %2 = tpu.matmul %1, %0, %cst {dimension_numbers = #tpu.dot_dimension_numbers<[1], [0], [0], [1], [0, 0, 1, 1], [], []>} : vector<16x4xbf16>, vector<4x128xbf16>, vector<16x128xf32> -> vector<16x128xf32>
    %c0_3 = arith.constant 0 : index
    %c0_4 = arith.constant 0 : index
    %3 = vector.load %arg3[%c0_3, %c0_4] : memref<16x1xf32, #tpu.memory_space<vmem>>, vector<16x1xf32>
    %4 = vector.broadcast %3 : vector<16x1xf32> to vector<16x128xf32>
    %5 = arith.addf %2, %4 : vector<16x128xf32>
    %cst_5 = arith.constant 0.000000e+00 : f32
    %6 = vector.broadcast %cst_5 : f32 to vector<16x128xf32>
    %7 = arith.maximumf %5, %6 : vector<16x128xf32>
    %c0_6 = arith.constant 0 : index
    %c0_7 = arith.constant 0 : index
    %8 = vector.load %arg4[%c0_6, %c0_7] : memref<16x16xbf16, #tpu.memory_space<vmem>>, vector<16x16xbf16>
    %9 = arith.truncf %7 : vector<16x128xf32> to vector<16x128xbf16>
    %cst_8 = arith.constant dense<0.000000e+00> : vector<16x128xf32>
    %10 = tpu.matmul %8, %9, %cst_8 {dimension_numbers = #tpu.dot_dimension_numbers<[1], [0], [0], [1], [0, 0, 1, 1], [], []>} : vector<16x16xbf16>, vector<16x128xbf16>, vector<16x128xf32> -> vector<16x128xf32>
    %c0_9 = arith.constant 0 : index
    %c0_10 = arith.constant 0 : index
    %11 = vector.load %arg5[%c0_9, %c0_10] : memref<16x1xf32, #tpu.memory_space<vmem>>, vector<16x1xf32>
    %12 = vector.broadcast %11 : vector<16x1xf32> to vector<16x128xf32>
    %13 = arith.addf %10, %12 : vector<16x128xf32>
    %cst_11 = arith.constant 0.000000e+00 : f32
    %14 = vector.broadcast %cst_11 : f32 to vector<16x128xf32>
    %15 = arith.maximumf %13, %14 : vector<16x128xf32>
    %c0_12 = arith.constant 0 : index
    %c0_13 = arith.constant 0 : index
    %16 = vector.load %arg6[%c0_12, %c0_13] : memref<16x1xf32, #tpu.memory_space<vmem>>, vector<16x1xf32>
    %17 = vector.broadcast %16 : vector<16x1xf32> to vector<16x128xf32>
    %18 = arith.mulf %15, %17 : vector<16x128xf32>
    %cst_14 = arith.constant dense<0.000000e+00> : vector<128xf32>
    %19 = vector.multi_reduction <add>, %18, %cst_14 [0] : vector<16x128xf32> to vector<128xf32>
    %20 = vector.shape_cast %19 : vector<128xf32> to vector<1x128xf32>
    %c0_15 = arith.constant 0 : index
    %c0_16 = arith.constant 0 : index
    %21 = vector.load %arg7[%c0_15, %c0_16] : memref<1x1xf32, #tpu.memory_space<vmem>>, vector<1x1xf32>
    %22 = vector.broadcast %21 : vector<1x1xf32> to vector<1x128xf32>
    %23 = arith.addf %20, %22 : vector<1x128xf32>
    %c0_17 = arith.constant 0 : index
    %c0_18 = arith.constant 0 : index
    %24 = vector.load %arg8[%c0_17, %c0_18] : memref<1x128xf32, #tpu.memory_space<vmem>>, vector<1x128xf32>
    tpu.vector_store %arg8[%c0_17, %c0_18], %23 {strides = array<i32>} : memref<1x128xf32, #tpu.memory_space<vmem>>, vector<1x128xf32>,
    return
  }
  func.func @transform_0(%arg0: i32) -> (i32, i32) {
    %c0_i32 = arith.constant 0 : i32
    %c0_i32_0 = arith.constant 0 : i32
    return %c0_i32, %arg0 : i32, i32
  }
  func.func @transform_1(%arg0: i32) -> (i32, i32) {
    %c0_i32 = arith.constant 0 : i32
    %c0_i32_0 = arith.constant 0 : i32
    %c0_i32_1 = arith.constant 0 : i32
    return %c0_i32, %c0_i32_0 : i32, i32
  }
  func.func @transform_2(%arg0: i32) -> (i32, i32) {
    %c0_i32 = arith.constant 0 : i32
    %c0_i32_0 = arith.constant 0 : i32
    %c0_i32_1 = arith.constant 0 : i32
    return %c0_i32, %c0_i32_0 : i32, i32
  }
  func.func @transform_3(%arg0: i32) -> (i32, i32) {
    %c0_i32 = arith.constant 0 : i32
    %c0_i32_0 = arith.constant 0 : i32
    %c0_i32_1 = arith.constant 0 : i32
    return %c0_i32, %c0_i32_0 : i32, i32
  }
  func.func @transform_4(%arg0: i32) -> (i32, i32) {
    %c0_i32 = arith.constant 0 : i32
    %c0_i32_0 = arith.constant 0 : i32
    %c0_i32_1 = arith.constant 0 : i32
    return %c0_i32, %c0_i32_0 : i32, i32
  }
  func.func @transform_5(%arg0: i32) -> (i32, i32) {
    %c0_i32 = arith.constant 0 : i32
    %c0_i32_0 = arith.constant 0 : i32
    %c0_i32_1 = arith.constant 0 : i32
    return %c0_i32, %c0_i32_0 : i32, i32
  }
  func.func @transform_6(%arg0: i32) -> (i32, i32) {
    %c0_i32 = arith.constant 0 : i32
    %c0_i32_0 = arith.constant 0 : i32
    %c0_i32_1 = arith.constant 0 : i32
    return %c0_i32, %c0_i32_0 : i32, i32
  }
  func.func @transform_7(%arg0: i32) -> (i32, i32) {
    %c0_i32 = arith.constant 0 : i32
    %c0_i32_0 = arith.constant 0 : i32
    return %c0_i32, %arg0 : i32, i32
  }
}

</mosaic_0001>

<llo_original>
// kernel: critic_forward_transposed.1
$region0: #{critic_forward_transposed.1}
  #allocation0 [shape = 'u32[]', space=smem, size = 0x4, offset = 0x4, fixed_abs, tag = 'smem constant byte address 0x4 - core index']
  #allocation1 [shape = 'u32[144,128]{1,0:T(1,128)}', space=vmem, size = 0x12000, scoped, tag = 'internal scratch']
  #allocation2 [shape = 'f32[1,1]{1,0:T(1,128)S(1)}', space=vmem, size = 0x200, scoped, tag = 'scoped memory for critic_forward_transposed.1']
  %s0 = inlined_call_operand.vmem [shape: bf16[4,128], index: 0, kind: input, shape index: {}]
  %s1 = inlined_call_operand.vmem [shape: bf16[16,4], index: 1, kind: input, shape index: {}]
  %s2 = inlined_call_operand.vmem [shape: f32[16,1], index: 2, kind: input, shape index: {}]
  %s3 = inlined_call_operand.vmem [shape: bf16[16,16], index: 3, kind: input, shape index: {}]
  %s4 = inlined_call_operand.vmem [shape: f32[16,1], index: 4, kind: input, shape index: {}]
  %s5 = inlined_call_operand.vmem [shape: f32[16,1], index: 5, kind: input, shape index: {}]
  %s6 = inlined_call_operand.<no memory space> [shape: f32[1,1], index: 6, kind: input, shape index: {}]
  %s7 = inlined_call_operand.hbm [shape: f32[1,128], index: 7, kind: output, shape index: {}]
  %s8 = sld [smem:[#allocation0]]
  $region38: #{critic_forward_transposed.1} parent=0
    _
  %s10 = ssub.s32 1, %s8
  %s11 = scalar_select 0, %s10, %s8
  %v12 = vstv %s6
  %13 = vst [vmem:[#allocation2] sm:$0x1] %v12
  $region1: #{critic_forward_transposed.1} parent=0
    #allocation3 [shape = 'u8[512]{0}', space=vmem, size = 0x400, scoped, tag = 'output window, operand 0, single buffered']
    #allocation4 [shape = 's32[1]{0}', space=sflag, size = 0x4, scoped, tag = 'scoped memory for critic_forward_transposed.1']
    %14 = vsyncpa [#allocation4], 0
    // Predicated region
    $region2: #{critic_forward_transposed.1} parent=1 // pred_check
      _
    $region3: #{critic_forward_transposed.1} parent=1 // pred_check_branch
      %16 = sbr.rel (0) target = $region5
    $region4: #{critic_forward_transposed.1} parent=1 // pred_region
      _
    $region5: #{critic_forward_transposed.1} parent=1 // pred_fallthru
      _
    // Predicated region
    $region6: #{critic_forward_transposed.1} parent=1 // pred_check
      _
    $region7: #{critic_forward_transposed.1} parent=1 // pred_check_branch
      %18 = sbr.rel (0) target = $region9
    $region8: #{critic_forward_transposed.1} parent=1 // pred_region
      _
    $region9: #{critic_forward_transposed.1} parent=1 // pred_fallthru
      _
    // Predicated region
    $region10: #{critic_forward_transposed.1} parent=1 // pred_check
      _
    $region11: #{critic_forward_transposed.1} parent=1 // pred_check_branch
      %20 = sbr.rel (0) target = $region13
    $region12: #{critic_forward_transposed.1} parent=1 // pred_region
      _
    $region13: #{critic_forward_transposed.1} parent=1 // pred_fallthru
      _
    // Predicated region
    $region14: #{critic_forward_transposed.1} parent=1 // pred_check
      _
    $region15: #{critic_forward_transposed.1} parent=1 // pred_check_branch
      %22 = sbr.rel (0) target = $region17
    $region16: #{critic_forward_transposed.1} parent=1 // pred_region
      _
    $region17: #{critic_forward_transposed.1} parent=1 // pred_fallthru
      _
    // Predicated region
    $region18: #{critic_forward_transposed.1} parent=1 // pred_check
      _
    $region19: #{critic_forward_transposed.1} parent=1 // pred_check_branch
      %24 = sbr.rel (0) target = $region21
    $region20: #{critic_forward_transposed.1} parent=1 // pred_region
      _
    $region21: #{critic_forward_transposed.1} parent=1 // pred_fallthru
      _
    // Predicated region
    $region22: #{critic_forward_transposed.1} parent=1 // pred_check
      _
    $region23: #{critic_forward_transposed.1} parent=1 // pred_check_branch
      %26 = sbr.rel (0) target = $region25
    $region24: #{critic_forward_transposed.1} parent=1 // pred_region
      _
    $region25: #{critic_forward_transposed.1} parent=1 // pred_fallthru
      _
    // Predicated region
    $region26: #{critic_forward_transposed.1} parent=1 // pred_check
      _
    $region27: #{critic_forward_transposed.1} parent=1 // pred_check_branch
      %28 = sbr.rel (0) target = $region29
    $region28: #{critic_forward_transposed.1} parent=1 // pred_region
      _
    $region29: #{critic_forward_transposed.1} parent=1 // pred_fallthru
      _
    %v30 = vld [vmem:[%s0] sm:$0x3]
    %v31 = vld [vmem:[%s1] sm:$0xf]
    %v32 = vld [vmem:[%s1 + $0x4] sm:$0xf]
    %v33 = vld [vmem:[%s2] sm:$0xff]
    %v34 = vld [vmem:[%s2 + $0x8] sm:$0xff]
    %36 = vset.pattern.permute.xlu0 0
    %37 = vperm.xlu0 %36, %v33
    %v38 = vpop.permute.xlu0 %37
    %41 = vset.pattern.permute.xlu0 0
    %42 = vperm.xlu0 %41, %v34
    %v43 = vpop.permute.xlu0 %42
    %v47 = vunpack.c.l.b16 %v31
    %v48 = vunpack.c.l.b16 %v32
    %v49 = vpack.c.b16 %v48, %v47
    %vm50 = vcmask 31744
    %v52 = vsel %vm50, %v49, 0
    %vm54 = vcmask 1041408
    %v56 = vsel %vm54, %v30, 0
    %58 = vmatprep.subr.bf16.mxu0 0
    %59 = vmatpush1.bf16.msra.mxu0 %v56
    %60 = vmatprep.subr.bf16.mxu0 0
    %61 = vmatpush1.bf16.msra.mxu0 0
    %62 = vmatprep.subr.bf16.mxu0 0
    %63 = vmatpush1.bf16.msra.mxu0 0
    %64 = vmatprep.subr.bf16.mxu0 0
    %65 = vmatpush1.bf16.msra.mxu0 0
    %66 = vmatprep.subr.bf16.mxu0 0
    %67 = vmatpush1.bf16.msra.mxu0 0
    %68 = vmatprep.subr.bf16.mxu0 0
    %69 = vmatpush1.bf16.msra.mxu0 0
    %70 = vmatprep.subr.bf16.mxu0 0
    %71 = vmatpush1.bf16.msra.mxu0 0
    %72 = vmatprep.subr.bf16.mxu0 0
    %73 = vmatpush1.bf16.msra.mxu0 0
    %74 = vmatprep.subr.bf16.mxu0 0
    %75 = vmatpush1.bf16.msra.mxu0 0
    %76 = vmatprep.subr.bf16.mxu0 0
    %77 = vmatpush1.bf16.msra.mxu0 0
    %78 = vmatprep.subr.bf16.mxu0 0
    %79 = vmatpush1.bf16.msra.mxu0 0
    %80 = vmatprep.subr.bf16.mxu0 0
    %81 = vmatpush1.bf16.msra.mxu0 0
    %82 = vmatprep.subr.bf16.mxu0 0
    %83 = vmatpush1.bf16.msra.mxu0 0
    %84 = vmatprep.subr.bf16.mxu0 0
    %85 = vmatpush1.bf16.msra.mxu0 0
    %86 = vmatprep.subr.bf16.mxu0 0
    %87 = vmatpush1.bf16.msra.mxu0 0
    %88 = vmatprep.subr.bf16.mxu0 0
    %89 = vmatpush1.bf16.msra.mxu0 0
    %90 = vmatprep.mubr.bf16.mxu0 0
    %91 = vmatmul.mubr.bf16.gmra.mrb[0].mxu0 %v52
    %v92 = vpop.f32.mrb[0].mxu0
    %v93 = vadd.f32 %v38, %v92
    %v94 = vpop.f32.mrb[0].mxu0
    %v95 = vpop.f32.mrb[0].mxu0
    %v96 = vadd.f32 %v43, %v95
    %v97 = vpop.f32.mrb[0].mxu0
    %98 = vdwg.mxu0
    %v99 = vmax.f32 %v93, 0.0
    %v100 = vmax.f32 %v96, 0.0
    %v101 = vld [vmem:[%s3] sm:$0xf]
    %v102 = vld [vmem:[%s3 + $0x4] sm:$0xf]
    %v103 = vpack.c.bf16 %v100, %v99
    %v104 = vld [vmem:[%s4] sm:$0xff]
    %v105 = vld [vmem:[%s4 + $0x8] sm:$0xff]
    %107 = vset.pattern.permute.xlu0 0
    %108 = vperm.xlu0 %107, %v104
    %v109 = vpop.permute.xlu0 %108
    %112 = vset.pattern.permute.xlu0 0
    %113 = vperm.xlu0 %112, %v105
    %v114 = vpop.permute.xlu0 %113
    %v118 = vunpack.c.l.b16 %v101
    %v119 = vunpack.c.l.b16 %v102
    %v120 = vpack.c.b16 %v119, %v118
    %vm121 = vcmask 130048
    %v123 = vsel %vm121, %v120, 0
    %125 = vmatprep.subr.bf16.mxu0 0
    %126 = vmatpush1.bf16.msra.mxu0 %v103
    %127 = vmatprep.subr.bf16.mxu0 0
    %128 = vmatpush1.bf16.msra.mxu0 0
    %129 = vmatprep.subr.bf16.mxu0 0
    %130 = vmatpush1.bf16.msra.mxu0 0
    %131 = vmatprep.subr.bf16.mxu0 0
    %132 = vmatpush1.bf16.msra.mxu0 0
    %133 = vmatprep.subr.bf16.mxu0 0
    %134 = vmatpush1.bf16.msra.mxu0 0
    %135 = vmatprep.subr.bf16.mxu0 0
    %136 = vmatpush1.bf16.msra.mxu0 0
    %137 = vmatprep.subr.bf16.mxu0 0
    %138 = vmatpush1.bf16.msra.mxu0 0
    %139 = vmatprep.subr.bf16.mxu0 0
    %140 = vmatpush1.bf16.msra.mxu0 0
    %141 = vmatprep.subr.bf16.mxu0 0
    %142 = vmatpush1.bf16.msra.mxu0 0
    %143 = vmatprep.subr.bf16.mxu0 0
    %144 = vmatpush1.bf16.msra.mxu0 0
    %145 = vmatprep.subr.bf16.mxu0 0
    %146 = vmatpush1.bf16.msra.mxu0 0
    %147 = vmatprep.subr.bf16.mxu0 0
    %148 = vmatpush1.bf16.msra.mxu0 0
    %149 = vmatprep.subr.bf16.mxu0 0
    %150 = vmatpush1.bf16.msra.mxu0 0
    %151 = vmatprep.subr.bf16.mxu0 0
    %152 = vmatpush1.bf16.msra.mxu0 0
    %153 = vmatprep.subr.bf16.mxu0 0
    %154 = vmatpush1.bf16.msra.mxu0 0
    %155 = vmatprep.subr.bf16.mxu0 0
    %156 = vmatpush1.bf16.msra.mxu0 0
    %157 = vmatprep.mubr.bf16.mxu0 0
    %158 = vmatmul.mubr.bf16.gmra.mrb[0].mxu0 %v123
    %v159 = vpop.f32.mrb[0].mxu0
    %v160 = vadd.f32 %v109, %v159
    %v161 = vpop.f32.mrb[0].mxu0
    %v162 = vpop.f32.mrb[0].mxu0
    %v163 = vadd.f32 %v114, %v162
    %v164 = vpop.f32.mrb[0].mxu0
    %165 = vdwg.mxu0
    %v166 = vmax.f32 %v160, 0.0
    %v167 = vmax.f32 %v163, 0.0
    %v168 = vld [vmem:[%s5] sm:$0xff]
    %v169 = vld [vmem:[%s5 + $0x8] sm:$0xff]
    %171 = vset.pattern.permute.xlu0 0
    %172 = vperm.xlu0 %171, %v168
    %v173 = vpop.permute.xlu0 %172
    %176 = vset.pattern.permute.xlu0 0
    %177 = vperm.xlu0 %176, %v169
    %v178 = vpop.permute.xlu0 %177
    %v180 = vmul.f32 %v166, %v173
    %v181 = vmul.f32 %v167, %v178
    %v182 = vadd.f32 %v180, %v181
    %v183 = vrot.slane %v182, 4
    %v184 = vadd.f32 %v182, %v183
    %v185 = vrot.slane %v184, 2
    %v186 = vadd.f32 %v184, %v185
    %v187 = vrot.slane %v186, 1
    %v188 = vadd.f32 %v186, %v187
    %v189 = vld [vmem:[#allocation2] sm:$0x1]
    %191 = vset.pattern.permute.xlu0 0
    %192 = vperm.xlu0 %191, %v189
    %v193 = vpop.permute.xlu0 %192
    %v195 = vlaneseq
    %v196 = vshrl.u32 %v195, 7
    %v197 = vsub.s32 0, %v196
    %v198 = vrot.slane %v193, %v197
    %v199 = vadd.f32 %v188, %v198
    %200 = vst [vmem:[#allocation3] sm:$0x1] %v199
    // Predicated region
    $region30: #{critic_forward_transposed.1} parent=1 // pred_check
      _
    $region31: #{critic_forward_transposed.1} parent=1 // pred_check_branch
      %202 = sbr.rel (0) target = $region33
    $region32: #{critic_forward_transposed.1} parent=1 // pred_region
      %s204 = ssub.s32 16, 16
      %205 = vsyncadd [#allocation4], %s204
      %s207 = sshll.u32 [#allocation3], 4
      %s208 = int_to_ptr.vmem [resolvable:$true] %s207
      %210 = dma.vmem_to_hbm [thread:$0]  %s208, 16, %s7, [#allocation4]
    $region33: #{critic_forward_transposed.1} parent=1 // pred_fallthru
      _
    // Predicated region
    $region34: #{critic_forward_transposed.1} parent=1 // pred_check
      _
    $region35: #{critic_forward_transposed.1} parent=1 // pred_check_branch
      %212 = sbr.rel (0) target = $region37
    $region36: #{critic_forward_transposed.1} parent=1 // pred_region
      %213 = dma.done [#allocation4], 16
    $region37: #{critic_forward_transposed.1} parent=1 // pred_fallthru
      _
    %214 = vsyncpa [#allocation4], 1

</llo_original>
